<compile_context>
chip_gen: v7x
topology: tpu7x:2x2x1
jax: 0.10.0
libtpu: 0.0.40
codegen_flags: <defaults>
</compile_context>

<pallas_src>
import jax
import jax.numpy as jnp
from jax.experimental import pallas as pl
from jax.experimental.pallas import tpu as pltpu


def _round_up(x: int, m: int) -> int:
    return (x + m - 1) // m * m


def _vmem_capacity_bytes() -> int:
    """Best-effort per-core VMEM capacity; conservative fallback (v7x-sized)."""
    try:
        info = pltpu.get_tpu_info()
        cap = getattr(info, "vmem_capacity_bytes", None)
        if cap:
            return int(cap)
    except Exception:
        pass
    return 64 * 1024 * 1024


def _make_kernel(n_rows: int, tile_n: int, c: int):
    inv_c = 1.0 / float(c)

    def kernel(logits_ref, targets_ref, out_ref):
        logits = logits_ref[...].astype(jnp.float32)    # (tile_n, c)
        targets = targets_ref[...].astype(jnp.float32)  # (tile_n, c)

        # log-sum-exp of logits per row (max-shifted; the shift is only
        # consumed by exp(), never materialized for a second phase).
        lmax = jnp.max(logits, axis=1, keepdims=True)                      # (tile_n, 1)
        lse = jnp.log(jnp.sum(jnp.exp(logits - lmax), axis=1, keepdims=True))

        # softmax(targets), fused: only sum(texp) and sum(texp * logits) needed.
        tmax = jnp.max(targets, axis=1, keepdims=True)                     # (tile_n, 1)
        texp = jnp.exp(targets - tmax)                                     # (tile_n, c)
        t_sum = jnp.sum(texp, axis=1, keepdims=True)                       # (tile_n, 1)
        tl_sum = jnp.sum(texp * logits, axis=1, keepdims=True)             # (tile_n, 1)

        # loss = mean_j(-p_j * (logits_j - lmax - lse))
        #      = (lmax + lse - sum_j texp_j*logits_j / t_sum) / C
        loss = (lmax + lse - tl_sum / t_sum) * inv_c                       # (tile_n, 1)

        # Mask rows past the true N (partial tail block reads undefined data).
        row = jax.lax.broadcasted_iota(jnp.int32, (tile_n, 1), 0)
        valid = (pl.program_id(0) * tile_n + row) < n_rows
        loss = jnp.where(valid, loss, 0.0)

        # Lane-dense store: one (1, tile_n) row per grid step.
        out_ref[...] = loss.reshape(1, tile_n).astype(out_ref.dtype)

    return kernel


def soft_entropy_loss(logits: jax.Array, targets: jax.Array,
                      *, tile_n: int | None = None) -> jax.Array:
    """logits, targets: (N, C). Returns loss of shape (N,), matching
    SoftEntropyLoss().forward(logits, targets) in PyTorch."""
    assert logits.shape == targets.shape and logits.ndim == 2
    n, c = logits.shape

    l_isz = jnp.dtype(logits.dtype).itemsize
    t_isz = jnp.dtype(targets.dtype).itemsize

    # --- Chip-aware budget ---------------------------------------------------
    vmem_cap = _vmem_capacity_bytes()
    if vmem_cap >= 96 * 1024 * 1024:        # v5e / v6e: 128 MiB physical VMEM
        target_block_bytes = 8 * 1024 * 1024
        vmem_limit_cap = 96 * 1024 * 1024
    else:                                    # v7x: 64 MiB per TensorCore
        target_block_bytes = int(2.5 * 1024 * 1024)
        vmem_limit_cap = 40 * 1024 * 1024

    # --- Row-tile size --------------------------------------------------------
    if tile_n is None:
        row_bytes = max(1, c * max(l_isz, t_isz))
        rows_by_bytes = (target_block_bytes // row_bytes) // 8 * 8
        rows_by_bytes = max(8, rows_by_bytes)   # guard: huge C -> 8-row blocks
        tile_n = max(8, min(_round_up(n, 8), rows_by_bytes))
        # Ensure >=2 grid steps (megacore sharding on v7x, DMA/compute overlap
        # everywhere) whenever there is more than one sublane-row of work.
        if _round_up(n, 8) >= 16:
            tile_n = min(tile_n, _round_up(pl.cdiv(n, 2), 8))
    else:
        tile_n = max(8, _round_up(tile_n, 8))

    num_tiles = pl.cdiv(n, tile_n)
    grid = (num_tiles,)

    # --- VMEM limit: 2 pipeline buffers per input + f32 working temps --------
    in_block_bytes = tile_n * c * (l_isz + t_isz)
    f32_temp_bytes = 3 * tile_n * c * 4
    need = 2 * in_block_bytes + f32_temp_bytes + (2 << 20)
    vmem_limit = int(min(max(need, 16 << 20), vmem_limit_cap))

    out = pl.pallas_call(
        _make_kernel(n, tile_n, c),
        out_shape=jax.ShapeDtypeStruct((num_tiles, tile_n), jnp.float32),
        grid_spec=pltpu.PrefetchScalarGridSpec(
            num_scalar_prefetch=0,
            grid=grid,
            in_specs=[
                pl.BlockSpec((tile_n, c), lambda i: (i, 0)),
                pl.BlockSpec((tile_n, c), lambda i: (i, 0)),
            ],
            out_specs=pl.BlockSpec((1, tile_n), lambda i: (i, 0)),
        ),
        compiler_params=pltpu.CompilerParams(
            # Row tiles are independent -> megacore sharding on v7x.
            dimension_semantics=("parallel",),
            vmem_limit_bytes=vmem_limit,
        ),
    )(logits, targets)

    return out.reshape(-1)[:n]


def _reference(logits, targets):
    log_probs = jax.nn.log_softmax(logits.astype(jnp.float32), axis=1)
    p = jax.nn.softmax(targets.astype(jnp.float32), axis=1)
    return jnp.mean(-p * log_probs, axis=1)


if __name__ == "__main__":
    key = jax.random.PRNGKey(0)
    k1, k2, k3, k4 = jax.random.split(key, 4)

    # Case 1: small smoke test matching the module's (N, C) contract.
    N, C = 8, 32
    logits = jax.random.normal(k1, (N, C), dtype=jnp.float32)
    targets = jax.random.normal(k2, (N, C), dtype=jnp.float32)
    loss = soft_entropy_loss(logits, targets)
    jax.block_until_ready(loss)
    ref = _reference(logits, targets)
    assert loss.shape == (N,)
    assert jnp.allclose(loss, ref, atol=1e-5, rtol=1e-5), (loss, ref)

    # Case 2: N not divisible by the tile -> multi-step grid with a partial
    # tail block (exercises the no-pad masking path and lane-dense output).
    N2, C2 = 20, 128
    logits2 = jax.random.normal(k3, (N2, C2), dtype=jnp.float32)
    targets2 = jax.random.normal(k4, (N2, C2), dtype=jnp.float32)
    loss2 = soft_entropy_loss(logits2, targets2, tile_n=8)
    jax.block_until_ready(loss2)
    ref2 = _reference(logits2, targets2)
    assert loss2.shape == (N2,)
    assert jnp.allclose(loss2, ref2, atol=1e-5, rtol=1e-5), (loss2, ref2)

    print("KERNEL_OK")
</pallas_src>

<mosaic_0001>
module attributes {stable_mosaic.version = 11 : i64} {
  func.func @kernel(%arg0: i32, %arg1: memref<8x32xf32, #tpu.memory_space<vmem>>, %arg2: memref<8x32xf32, #tpu.memory_space<vmem>>, %arg3: memref<1x8xf32, #tpu.memory_space<vmem>>) attributes {dimension_semantics = [#tpu.dimension_semantics<parallel>], iteration_bounds = array<i64: 1>, scalar_prefetch = 0 : i64, scratch_operands = 0 : i64, tpu.core_type = #tpu.core_type<tc>, window_params = [{transform_indices = @transform_0, window_bounds = array<i64: 8, 32>}, {transform_indices = @transform_1, window_bounds = array<i64: 8, 32>}, {transform_indices = @transform_2, window_bounds = array<i64: 1, 8>}]} {
    %c0 = arith.constant 0 : index
    %c0_0 = arith.constant 0 : index
    %0 = vector.load %arg1[%c0, %c0_0] : memref<8x32xf32, #tpu.memory_space<vmem>>, vector<8x32xf32>
    %c0_1 = arith.constant 0 : index
    %c0_2 = arith.constant 0 : index
    %1 = vector.load %arg2[%c0_1, %c0_2] : memref<8x32xf32, #tpu.memory_space<vmem>>, vector<8x32xf32>
    %cst = arith.constant dense<0xFF800000> : vector<8xf32>
    %2 = vector.multi_reduction <maximumf>, %0, %cst [1] : vector<8x32xf32> to vector<8xf32>
    %3 = vector.shape_cast %2 : vector<8xf32> to vector<8x1xf32>
    %4 = vector.broadcast %3 : vector<8x1xf32> to vector<8x32xf32>
    %5 = arith.subf %0, %4 : vector<8x32xf32>
    %6 = math.exp %5 : vector<8x32xf32>
    %cst_3 = arith.constant dense<0.000000e+00> : vector<8xf32>
    %7 = vector.multi_reduction <add>, %6, %cst_3 [1] : vector<8x32xf32> to vector<8xf32>
    %8 = vector.shape_cast %7 : vector<8xf32> to vector<8x1xf32>
    %9 = math.log %8 : vector<8x1xf32>
    %cst_4 = arith.constant dense<0xFF800000> : vector<8xf32>
    %10 = vector.multi_reduction <maximumf>, %1, %cst_4 [1] : vector<8x32xf32> to vector<8xf32>
    %11 = vector.shape_cast %10 : vector<8xf32> to vector<8x1xf32>
    %12 = vector.broadcast %11 : vector<8x1xf32> to vector<8x32xf32>
    %13 = arith.subf %1, %12 : vector<8x32xf32>
    %14 = math.exp %13 : vector<8x32xf32>
    %cst_5 = arith.constant dense<0.000000e+00> : vector<8xf32>
    %15 = vector.multi_reduction <add>, %14, %cst_5 [1] : vector<8x32xf32> to vector<8xf32>
    %16 = vector.shape_cast %15 : vector<8xf32> to vector<8x1xf32>
    %17 = arith.mulf %14, %0 : vector<8x32xf32>
    %cst_6 = arith.constant dense<0.000000e+00> : vector<8xf32>
    %18 = vector.multi_reduction <add>, %17, %cst_6 [1] : vector<8x32xf32> to vector<8xf32>
    %19 = vector.shape_cast %18 : vector<8xf32> to vector<8x1xf32>
    %20 = arith.addf %3, %9 : vector<8x1xf32>
    %21 = arith.divf %19, %16 : vector<8x1xf32>
    %22 = arith.subf %20, %21 : vector<8x1xf32>
    %cst_7 = arith.constant 3.125000e-02 : f32
    %23 = vector.broadcast %cst_7 : f32 to vector<8x1xf32>
    %24 = arith.mulf %22, %23 : vector<8x1xf32>
    %25 = tpu.iota {dimensions = array<i32: 0>} : vector<8x1xi32>
    %c8_i32 = arith.constant 8 : i32
    %26 = arith.muli %arg0, %c8_i32 : i32
    %27 = vector.broadcast %26 : i32 to vector<8x1xi32>
    %28 = arith.addi %27, %25 : vector<8x1xi32>
    %c8_i32_8 = arith.constant 8 : i32
    %29 = vector.broadcast %c8_i32_8 : i32 to vector<8x1xi32>
    %30 = arith.cmpi slt, %28, %29 : vector<8x1xi32>
    %cst_9 = arith.constant 0.000000e+00 : f32
    %31 = vector.broadcast %cst_9 : f32 to vector<8x1xf32>
    %32 = arith.select %30, %24, %31 : vector<8x1xi1>, vector<8x1xf32>
    %33 = vector.shape_cast %32 : vector<8x1xf32> to vector<1x8xf32>
    %c0_10 = arith.constant 0 : index
    %c0_11 = arith.constant 0 : index
    %34 = vector.load %arg3[%c0_10, %c0_11] : memref<1x8xf32, #tpu.memory_space<vmem>>, vector<1x8xf32>
    tpu.vector_store %arg3[%c0_10, %c0_11], %33 {strides = array<i32>} : memref<1x8xf32, #tpu.memory_space<vmem>>, vector<1x8xf32>,
    return
  }
  func.func @transform_0(%arg0: i32) -> (i32, i32) {
    %c0_i32 = arith.constant 0 : i32
    %c0_i32_0 = arith.constant 0 : i32
    return %arg0, %c0_i32 : i32, i32
  }
  func.func @transform_1(%arg0: i32) -> (i32, i32) {
    %c0_i32 = arith.constant 0 : i32
    %c0_i32_0 = arith.constant 0 : i32
    return %arg0, %c0_i32 : i32, i32
  }
  func.func @transform_2(%arg0: i32) -> (i32, i32) {
    %c0_i32 = arith.constant 0 : i32
    %c0_i32_0 = arith.constant 0 : i32
    return %arg0, %c0_i32 : i32, i32
  }
}

</mosaic_0001>

<llo_original>
// kernel: tpu_custom_call.1
$region0: #{tpu_custom_call.1}
  #allocation0 [shape = 'u32[]', space=smem, size = 0x4, offset = 0x4, fixed_abs, tag = 'smem constant byte address 0x4 - core index']
  #allocation1 [shape = 'u32[144,128]{1,0:T(1,128)}', space=vmem, size = 0x12000, scoped, tag = 'internal scratch']
  %s0 = inlined_call_operand.hbm [shape: f32[8,32], index: 0, kind: input, shape index: {}]
  %s1 = inlined_call_operand.hbm [shape: f32[8,32], index: 1, kind: input, shape index: {}]
  %s2 = inlined_call_operand.hbm [shape: f32[1,8], index: 2, kind: output, shape index: {}]
  %s3 = sld [smem:[#allocation0]]
  $region26: #{tpu_custom_call.1} parent=0
    _
  %s5 = ssub.s32 1, %s3
  %s6 = scalar_select 0, %s5, %s3
  $region1: #{tpu_custom_call.1} parent=0
    #allocation2 [shape = 'u8[4096]{0}', space=vmem, size = 0x1000, scoped, tag = 'input window, operand 0, single buffered']
    #allocation3 [shape = 's32[1]{0}', space=sflag, size = 0x4, scoped, tag = 'scoped memory for tpu_custom_call.1']
    #allocation4 [shape = 's32[1]{0}', space=sflag, size = 0x4, scoped, tag = 'scoped memory for tpu_custom_call.1']
    #allocation5 [shape = 'u8[4096]{0}', space=vmem, size = 0x1000, scoped, tag = 'input window, operand 1, single buffered']
    #allocation6 [shape = 's32[1]{0}', space=sflag, size = 0x4, scoped, tag = 'scoped memory for tpu_custom_call.1']
    #allocation7 [shape = 'u8[512]{0}', space=vmem, size = 0x400, scoped, tag = 'output window, operand 0, single buffered']
    %7 = vsyncpa [#allocation3], 0
    %8 = vsyncpa [#allocation6], 0
    %9 = vsyncpa [#allocation4], 0
    // Predicated region
    $region2: #{tpu_custom_call.1} parent=1 // pred_check
      _
    $region3: #{tpu_custom_call.1} parent=1 // pred_check_branch
      %11 = sbr.rel (0) target = $region5
    $region4: #{tpu_custom_call.1} parent=1 // pred_region
      %s13 = ssub.s32 128, 128
      %14 = vsyncadd [#allocation3], %s13
      %s16 = sshll.u32 [#allocation2], 4
      %s17 = int_to_ptr.vmem [resolvable:$true] %s16
      %19 = dma.hbm_to_vmem [thread:$0]  %s0, 128, %s17, [#allocation3]
    $region5: #{tpu_custom_call.1} parent=1 // pred_fallthru
      _
    // Predicated region
    $region6: #{tpu_custom_call.1} parent=1 // pred_check
      _
    $region7: #{tpu_custom_call.1} parent=1 // pred_check_branch
      %21 = sbr.rel (0) target = $region9
    $region8: #{tpu_custom_call.1} parent=1 // pred_region
      %s23 = ssub.s32 128, 128
      %24 = vsyncadd [#allocation6], %s23
      %s26 = sshll.u32 [#allocation5], 4
      %s27 = int_to_ptr.vmem [resolvable:$true] %s26
      %29 = dma.hbm_to_vmem [thread:$0]  %s1, 128, %s27, [#allocation6]
    $region9: #{tpu_custom_call.1} parent=1 // pred_fallthru
      _
    // Predicated region
    $region10: #{tpu_custom_call.1} parent=1 // pred_check
      _
    $region11: #{tpu_custom_call.1} parent=1 // pred_check_branch
      %31 = sbr.rel (0) target = $region13
    $region12: #{tpu_custom_call.1} parent=1 // pred_region
      %32 = dma.done [#allocation3], 128
    $region13: #{tpu_custom_call.1} parent=1 // pred_fallthru
      _
    // Predicated region
    $region14: #{tpu_custom_call.1} parent=1 // pred_check
      _
    $region15: #{tpu_custom_call.1} parent=1 // pred_check_branch
      %34 = sbr.rel (0) target = $region17
    $region16: #{tpu_custom_call.1} parent=1 // pred_region
      %35 = dma.done [#allocation6], 128
    $region17: #{tpu_custom_call.1} parent=1 // pred_fallthru
      _
    %v36 = vld [vmem:[#allocation2] sm:$0xff]
    %v37 = vld [vmem:[#allocation5] sm:$0xff]
    %vm38 = vcmask 261120
    %v39 = vsel %vm38, %v36, -inf
    %40 = vmax.xlane.f32.xlu0 %v39
    %v41 = vpop.xlane.xlu0 %40
    %v42 = vsub.f32 %v36, %v41
    %v43 = vmul.f32 %v42, 1.442695
    %v44 = vpow.pop %v43
    %v45 = vsel %vm38, %v44, 0.0
    %46 = vadd.xlane.f32.xlu0 %v45
    %v47 = vpop.xlane.xlu0 %46
    %v48 = vlog2.pop %v47
    %v49 = vmul.f32 %v48, 0.6931472
    %v50 = vsel %vm38, %v37, -inf
    %51 = vmax.xlane.f32.xlu0 %v50
    %v52 = vpop.xlane.xlu0 %51
    %v53 = vsub.f32 %v37, %v52
    %v54 = vmul.f32 %v53, 1.442695
    %v55 = vpow.pop %v54
    %v56 = vsel %vm38, %v55, 0.0
    %57 = vadd.xlane.f32.xlu0 %v56
    %v58 = vpop.xlane.xlu0 %57
    %v59 = vmul.f32 %v55, %v36
    %v60 = vsel %vm38, %v59, 0.0
    %61 = vadd.xlane.f32.xlu0 %v60
    %v62 = vpop.xlane.xlu0 %61
    %v63 = vadd.f32 %v41, %v49
    %v64 = vrcp.pop %v58
    %v65 = vmul.f32 %v62, %v64
    %v66 = vsub.f32 %v63, %v65
    %v67 = vmul.f32 %v66, 0.03125
    %v68 = vlaneseq
    %v69 = vshrl.u32 %v68, 7
    %s70 = smul.u32 0, 8
    %v71 = vstv %s70
    %v72 = vadd.s32 %v71, %v69
    %vm73 = vcmp.lt.s32.totalorder %v72, 8
    %v74 = vsel %vm73, %v67, 0.0
    %v76 = vlaneseq
    %v77 = vand.u32 %v76, 127
    %v78 = vlaneseq
    %v79 = vshrl.u32 %v78, 7
    %v80 = vsub.s32 %v77, %v79
    %v81 = vrot.slane %v74, %v80
    %vm83 = vcmask 57344
    %84 = vst.msk [vmem:[#allocation7] sm:$0x1] %vm83, %v81
    // Predicated region
    $region18: #{tpu_custom_call.1} parent=1 // pred_check
      _
    $region19: #{tpu_custom_call.1} parent=1 // pred_check_branch
      %86 = sbr.rel (0) target = $region21
    $region20: #{tpu_custom_call.1} parent=1 // pred_region
      %s88 = ssub.s32 16, 16
      %89 = vsyncadd [#allocation4], %s88
      %s91 = sshll.u32 [#allocation7], 4
      %s92 = int_to_ptr.vmem [resolvable:$true] %s91
      %94 = dma.vmem_to_hbm [thread:$0]  %s92, 16, %s2, [#allocation4]
    $region21: #{tpu_custom_call.1} parent=1 // pred_fallthru
      _
    // Predicated region
    $region22: #{tpu_custom_call.1} parent=1 // pred_check
      _
    $region23: #{tpu_custom_call.1} parent=1 // pred_check_branch
      %96 = sbr.rel (0) target = $region25
    $region24: #{tpu_custom_call.1} parent=1 // pred_region
      %97 = dma.done [#allocation4], 16
    $region25: #{tpu_custom_call.1} parent=1 // pred_fallthru
      _
    %98 = vsyncpa [#allocation3], 1
    %99 = vsyncpa [#allocation6], 1
    %100 = vsyncpa [#allocation4], 1

</llo_original>
